<compile_context>
chip_gen: v6e
topology: v6e:2x2x1
jax: 0.10.0
libtpu: 0.0.40
codegen_flags: <defaults>
</compile_context>

<pallas_src>
import functools

import jax
import jax.numpy as jnp
from jax import lax
from jax.experimental import pallas as pl
from jax.experimental.pallas import tpu as pltpu


def _round_up(n, m):
    return ((n + m - 1) // m) * m


def _critic_kernel(x_ref, a_ref, w1x_ref, w1a_ref, b1_ref, w2_ref, b2_ref,
                   w3_ref, b3_ref, out_ref):
    # In-kernel cast of the f32 activation tiles (VPU has plenty of slack here).
    xb = x_ref[...].astype(jnp.bfloat16)
    ab = a_ref[...].astype(jnp.bfloat16)

    # ----- Layer 1 (concat fused): h1 = relu(x @ W1x + a @ W1a + b1) -----
    h1 = jnp.dot(xb, w1x_ref[...], preferred_element_type=jnp.float32)
    h1 = h1 + jnp.dot(ab, w1a_ref[...], preferred_element_type=jnp.float32)
    h1 = jnp.maximum(h1 + b1_ref[...], 0.0)

    # ----- Layer 2: h2 = relu(h1 @ W2 + b2)  (bf16 MXU, f32 accumulate) -----
    h2 = jnp.dot(h1.astype(jnp.bfloat16), w2_ref[...],
                 preferred_element_type=jnp.float32)
    h2 = jnp.maximum(h2 + b2_ref[...], 0.0)

    # ----- Layer 3: N=1 output, computed lane-dense as (1, TB) = W3 . h2^T -----
    # TODO(synk): verify with pl.lower_as_mlir that this contraction does not emit
    # a full (TB, 64) vxpose of h2; if it does, switch to h2 @ w3_col and transpose
    # only the skinny (TB, 1) result.
    q = lax.dot_general(w3_ref[...], h2.astype(jnp.bfloat16),
                        dimension_numbers=(((1,), (1,)), ((), ())),
                        preferred_element_type=jnp.float32)        # (1, TB)
    out_ref[...] = (q + b3_ref[0]).astype(out_ref.dtype)


@functools.partial(jax.jit, static_argnames=("block_b",))
def critic_forward(x, a, params, *, block_b=4096):
    """MADDPG critic: x [B, obs], a [B, act] -> Q [B, 1] (float32)."""
    B, obs = x.shape
    act = a.shape[1]
    H = params["w2"].shape[0]

    block_b = max(_round_up(block_b, 128), 128)
    if B >= 256:
        # >=2 grid steps (v7x megacore sharding of the "parallel" batch axis) and
        # multiple-of-128 lane-dense output blocks; capped at block_b so very large
        # batches still use big tiles that amortize per-step pipeline overhead.
        tb = min(block_b, _round_up((B + 1) // 2, 128))
    else:
        # Single small tile; f32 input tiles only need 8-row (sublane) alignment
        # (the bf16 operands are the weights, whose tiles do not depend on tb).
        tb = _round_up(B, 8)

    n_blocks = (B + tb - 1) // tb      # ragged last block handled by Pallas
    b_out = n_blocks * tb              # output over-allocation only (no input pad)

    w1x, w1a, w2, w3 = params["w1x"], params["w1a"], params["w2"], params["w3"]
    b1, b2, b3 = params["b1"], params["b2"], params["b3"]

    const = lambda shape: pl.BlockSpec(shape, lambda i: (0, 0))

    # Rough per-tile VMEM: double-buffered input tiles + f32 intermediates; raise
    # the scoped limit (48 MiB is safe on v5e/v6e/v7x) only for big tiles.
    vmem_limit = 48 * 1024 * 1024 if tb >= 2048 else None

    q_row = pl.pallas_call(
        _critic_kernel,
        out_shape=jax.ShapeDtypeStruct((1, b_out), jnp.float32),
        grid=(n_blocks,),
        in_specs=[
            pl.BlockSpec((tb, obs), lambda i: (i, 0)),          # x tile (caller dtype)
            pl.BlockSpec((tb, act), lambda i: (i, 0)),          # a tile (caller dtype)
            const((obs, H)),                                    # W1[:obs]  (resident)
            const((act, H)),                                    # W1[obs:]  (resident)
            const((1, H)),                                      # b1
            const((H, H)),                                      # W2
            const((1, H)),                                      # b2
            const((1, H)),                                      # W3 as a row
            pl.BlockSpec(memory_space=pltpu.MemorySpace.SMEM),  # b3 scalar
        ],
        out_specs=pl.BlockSpec((1, tb), lambda i: (0, i)),      # lane-dense store
        compiler_params=pltpu.CompilerParams(
            dimension_semantics=("parallel",),
            vmem_limit_bytes=vmem_limit,
        ),
    )(x, a, w1x, w1a, b1, w2, b2, w3, b3)

    return q_row[0, :B].reshape(B, 1)


def init_critic_params(key, obs_size, act_size, hidden=64):
    """Torch-style U(-1/sqrt(fan_in), 1/sqrt(fan_in)) init.
    Weights are stored pre-transposed ([in, out]), with W1 pre-split into
    W1x/W1a, in bfloat16; biases stay float32."""
    ks = jax.random.split(key, 6)
    in0 = obs_size + act_size

    def lin(kw, kb, fan_in, fan_out):
        bound = 1.0 / (fan_in ** 0.5)
        w = jax.random.uniform(kw, (fan_in, fan_out), jnp.float32, -bound, bound)
        b = jax.random.uniform(kb, (fan_out,), jnp.float32, -bound, bound)
        return w, b

    w1, b1 = lin(ks[0], ks[1], in0, hidden)
    w2, b2 = lin(ks[2], ks[3], hidden, hidden)
    w3, b3 = lin(ks[4], ks[5], hidden, 1)

    return dict(
        w1x=w1[:obs_size].astype(jnp.bfloat16),
        w1a=w1[obs_size:].astype(jnp.bfloat16),
        b1=b1.reshape(1, hidden),
        w2=w2.astype(jnp.bfloat16),
        b2=b2.reshape(1, hidden),
        w3=w3.T.astype(jnp.bfloat16),     # (1, hidden) row
        b3=b3.reshape(1),                 # SMEM scalar
    )


def _reference(x, a, params):
    # Plain-JAX reference replicating the kernel's bf16-operand / f32-accumulate math.
    f32 = lambda t: t.astype(jnp.float32)
    xb, ab = f32(x.astype(jnp.bfloat16)), f32(a.astype(jnp.bfloat16))
    h1 = jnp.maximum(xb @ f32(params["w1x"]) + ab @ f32(params["w1a"]) + params["b1"], 0.0)
    h1 = f32(h1.astype(jnp.bfloat16))
    h2 = jnp.maximum(h1 @ f32(params["w2"]) + params["b2"], 0.0)
    h2 = f32(h2.astype(jnp.bfloat16))
    return h2 @ f32(params["w3"]).T + params["b3"]          # [B, 1]


if __name__ == "__main__":
    obs_size, act_size = 16, 8

    key = jax.random.PRNGKey(0)
    kx, ka, kp = jax.random.split(key, 3)
    params = init_critic_params(kp, obs_size, act_size)

    # Small batch: single tile, no ragged block.
    batch = 8
    x = jax.random.normal(kx, (batch, obs_size), jnp.float32)
    a = jax.random.normal(ka, (batch, act_size), jnp.float32)
    q = critic_forward(x, a, params)
    jax.block_until_ready(q)
    assert q.shape == (batch, 1)
    q_ref = _reference(x, a, params)
    assert jnp.allclose(q, q_ref, atol=2e-3, rtol=2e-3), \
        float(jnp.max(jnp.abs(q - q_ref)))

    # Medium batch: exercises the multi-block grid with a ragged last block
    # (2 grid steps, no input padding pass).
    batch2 = 260
    x2 = jax.random.normal(kx, (batch2, obs_size), jnp.float32)
    a2 = jax.random.normal(ka, (batch2, act_size), jnp.float32)
    q2 = critic_forward(x2, a2, params)
    jax.block_until_ready(q2)
    assert q2.shape == (batch2, 1)
    q2_ref = _reference(x2, a2, params)
    assert jnp.allclose(q2, q2_ref, atol=2e-3, rtol=2e-3), \
        float(jnp.max(jnp.abs(q2 - q2_ref)))

    print("KERNEL_OK")
</pallas_src>

<mosaic_0001>
module attributes {stable_mosaic.version = 11 : i64} {
  func.func @_critic_kernel(%arg0: i32, %arg1: memref<8x16xf32, #tpu.memory_space<vmem>>, %arg2: memref<8x8xf32, #tpu.memory_space<vmem>>, %arg3: memref<16x64xbf16, #tpu.memory_space<vmem>>, %arg4: memref<8x64xbf16, #tpu.memory_space<vmem>>, %arg5: memref<1x64xf32, #tpu.memory_space<vmem>>, %arg6: memref<64x64xbf16, #tpu.memory_space<vmem>>, %arg7: memref<1x64xf32, #tpu.memory_space<vmem>>, %arg8: memref<1x64xbf16, #tpu.memory_space<vmem>>, %arg9: memref<1xf32, #tpu.memory_space<smem>>, %arg10: memref<1x8xf32, #tpu.memory_space<vmem>>) attributes {dimension_semantics = [#tpu.dimension_semantics<parallel>], iteration_bounds = array<i64: 1>, scalar_prefetch = 0 : i64, scratch_operands = 0 : i64, tpu.core_type = #tpu.core_type<tc>, window_params = [{transform_indices = @transform_0, window_bounds = array<i64: 8, 16>}, {transform_indices = @transform_1, window_bounds = array<i64: 8, 8>}, {pipeline_mode = #tpu.pipeline_mode<synchronous>, transform_indices = @transform_2, window_bounds = array<i64: 16, 64>}, {pipeline_mode = #tpu.pipeline_mode<synchronous>, transform_indices = @transform_3, window_bounds = array<i64: 8, 64>}, {pipeline_mode = #tpu.pipeline_mode<synchronous>, transform_indices = @transform_4, window_bounds = array<i64: 1, 64>}, {pipeline_mode = #tpu.pipeline_mode<synchronous>, transform_indices = @transform_5, window_bounds = array<i64: 64, 64>}, {pipeline_mode = #tpu.pipeline_mode<synchronous>, transform_indices = @transform_6, window_bounds = array<i64: 1, 64>}, {pipeline_mode = #tpu.pipeline_mode<synchronous>, transform_indices = @transform_7, window_bounds = array<i64: 1, 64>}, {transform_indices = @transform_8, window_bounds = array<i64: 1>}, {transform_indices = @transform_9, window_bounds = array<i64: 1, 8>}]} {
    %c0 = arith.constant 0 : index
    %c0_0 = arith.constant 0 : index
    %0 = vector.load %arg1[%c0, %c0_0] : memref<8x16xf32, #tpu.memory_space<vmem>>, vector<8x16xf32>
    %1 = arith.truncf %0 : vector<8x16xf32> to vector<8x16xbf16>
    %c0_1 = arith.constant 0 : index
    %c0_2 = arith.constant 0 : index
    %2 = vector.load %arg2[%c0_1, %c0_2] : memref<8x8xf32, #tpu.memory_space<vmem>>, vector<8x8xf32>
    %3 = arith.truncf %2 : vector<8x8xf32> to vector<8x8xbf16>
    %c0_3 = arith.constant 0 : index
    %c0_4 = arith.constant 0 : index
    %4 = vector.load %arg3[%c0_3, %c0_4] : memref<16x64xbf16, #tpu.memory_space<vmem>>, vector<16x64xbf16>
    %cst = arith.constant dense<0.000000e+00> : vector<8x64xf32>
    %5 = tpu.matmul %1, %4, %cst {dimension_numbers = #tpu.dot_dimension_numbers<[1], [0], [0], [1], [0, 0, 1, 1], [], []>} : vector<8x16xbf16>, vector<16x64xbf16>, vector<8x64xf32> -> vector<8x64xf32>
    %c0_5 = arith.constant 0 : index
    %c0_6 = arith.constant 0 : index
    %6 = vector.load %arg4[%c0_5, %c0_6] : memref<8x64xbf16, #tpu.memory_space<vmem>>, vector<8x64xbf16>
    %cst_7 = arith.constant dense<0.000000e+00> : vector<8x64xf32>
    %7 = tpu.matmul %3, %6, %cst_7 {dimension_numbers = #tpu.dot_dimension_numbers<[1], [0], [0], [1], [0, 0, 1, 1], [], []>} : vector<8x8xbf16>, vector<8x64xbf16>, vector<8x64xf32> -> vector<8x64xf32>
    %8 = arith.addf %5, %7 : vector<8x64xf32>
    %c0_8 = arith.constant 0 : index
    %c0_9 = arith.constant 0 : index
    %9 = vector.load %arg5[%c0_8, %c0_9] : memref<1x64xf32, #tpu.memory_space<vmem>>, vector<1x64xf32>
    %10 = vector.broadcast %9 : vector<1x64xf32> to vector<8x64xf32>
    %11 = arith.addf %8, %10 : vector<8x64xf32>
    %cst_10 = arith.constant 0.000000e+00 : f32
    %12 = vector.broadcast %cst_10 : f32 to vector<8x64xf32>
    %13 = arith.maximumf %11, %12 : vector<8x64xf32>
    %14 = arith.truncf %13 : vector<8x64xf32> to vector<8x64xbf16>
    %c0_11 = arith.constant 0 : index
    %c0_12 = arith.constant 0 : index
    %15 = vector.load %arg6[%c0_11, %c0_12] : memref<64x64xbf16, #tpu.memory_space<vmem>>, vector<64x64xbf16>
    %cst_13 = arith.constant dense<0.000000e+00> : vector<8x64xf32>
    %16 = tpu.matmul %14, %15, %cst_13 {dimension_numbers = #tpu.dot_dimension_numbers<[1], [0], [0], [1], [0, 0, 1, 1], [], []>} : vector<8x64xbf16>, vector<64x64xbf16>, vector<8x64xf32> -> vector<8x64xf32>
    %c0_14 = arith.constant 0 : index
    %c0_15 = arith.constant 0 : index
    %17 = vector.load %arg7[%c0_14, %c0_15] : memref<1x64xf32, #tpu.memory_space<vmem>>, vector<1x64xf32>
    %18 = vector.broadcast %17 : vector<1x64xf32> to vector<8x64xf32>
    %19 = arith.addf %16, %18 : vector<8x64xf32>
    %cst_16 = arith.constant 0.000000e+00 : f32
    %20 = vector.broadcast %cst_16 : f32 to vector<8x64xf32>
    %21 = arith.maximumf %19, %20 : vector<8x64xf32>
    %c0_17 = arith.constant 0 : index
    %c0_18 = arith.constant 0 : index
    %22 = vector.load %arg8[%c0_17, %c0_18] : memref<1x64xbf16, #tpu.memory_space<vmem>>, vector<1x64xbf16>
    %23 = arith.truncf %21 : vector<8x64xf32> to vector<8x64xbf16>
    %cst_19 = arith.constant dense<0.000000e+00> : vector<1x8xf32>
    %24 = tpu.matmul %22, %23, %cst_19 {dimension_numbers = #tpu.dot_dimension_numbers<[1], [1], [0], [0], [0, 0, 1, 0], [], []>} : vector<1x64xbf16>, vector<8x64xbf16>, vector<1x8xf32> -> vector<1x8xf32>
    %c0_20 = arith.constant 0 : index
    %25 = memref.load %arg9[%c0_20] : memref<1xf32, #tpu.memory_space<smem>>
    %26 = vector.broadcast %25 : f32 to vector<1x8xf32>
    %27 = arith.addf %24, %26 : vector<1x8xf32>
    %c0_21 = arith.constant 0 : index
    %c0_22 = arith.constant 0 : index
    %28 = vector.load %arg10[%c0_21, %c0_22] : memref<1x8xf32, #tpu.memory_space<vmem>>, vector<1x8xf32>
    tpu.vector_store %arg10[%c0_21, %c0_22], %27 {strides = array<i32>} : memref<1x8xf32, #tpu.memory_space<vmem>>, vector<1x8xf32>,
    return
  }
  func.func @transform_0(%arg0: i32) -> (i32, i32) {
    %c0_i32 = arith.constant 0 : i32
    %c0_i32_0 = arith.constant 0 : i32
    return %arg0, %c0_i32 : i32, i32
  }
  func.func @transform_1(%arg0: i32) -> (i32, i32) {
    %c0_i32 = arith.constant 0 : i32
    %c0_i32_0 = arith.constant 0 : i32
    return %arg0, %c0_i32 : i32, i32
  }
  func.func @transform_2(%arg0: i32) -> (i32, i32) {
    %c0_i32 = arith.constant 0 : i32
    %c0_i32_0 = arith.constant 0 : i32
    %c0_i32_1 = arith.constant 0 : i32
    return %c0_i32, %c0_i32_0 : i32, i32
  }
  func.func @transform_3(%arg0: i32) -> (i32, i32) {
    %c0_i32 = arith.constant 0 : i32
    %c0_i32_0 = arith.constant 0 : i32
    %c0_i32_1 = arith.constant 0 : i32
    return %c0_i32, %c0_i32_0 : i32, i32
  }
  func.func @transform_4(%arg0: i32) -> (i32, i32) {
    %c0_i32 = arith.constant 0 : i32
    %c0_i32_0 = arith.constant 0 : i32
    %c0_i32_1 = arith.constant 0 : i32
    return %c0_i32, %c0_i32_0 : i32, i32
  }
  func.func @transform_5(%arg0: i32) -> (i32, i32) {
    %c0_i32 = arith.constant 0 : i32
    %c0_i32_0 = arith.constant 0 : i32
    %c0_i32_1 = arith.constant 0 : i32
    return %c0_i32, %c0_i32_0 : i32, i32
  }
  func.func @transform_6(%arg0: i32) -> (i32, i32) {
    %c0_i32 = arith.constant 0 : i32
    %c0_i32_0 = arith.constant 0 : i32
    %c0_i32_1 = arith.constant 0 : i32
    return %c0_i32, %c0_i32_0 : i32, i32
  }
  func.func @transform_7(%arg0: i32) -> (i32, i32) {
    %c0_i32 = arith.constant 0 : i32
    %c0_i32_0 = arith.constant 0 : i32
    %c0_i32_1 = arith.constant 0 : i32
    return %c0_i32, %c0_i32_0 : i32, i32
  }
  func.func @transform_8(%arg0: i32) -> i32 {
    %c0_i32 = arith.constant 0 : i32
    %c0_i32_0 = arith.constant 0 : i32
    return %c0_i32 : i32
  }
  func.func @transform_9(%arg0: i32) -> (i32, i32) {
    %c0_i32 = arith.constant 0 : i32
    %c0_i32_0 = arith.constant 0 : i32
    return %c0_i32, %arg0 : i32, i32
  }
}

</mosaic_0001>

<llo_original>
// kernel: critic_forward.1
$region0: #{critic_forward.1}
  #allocation0 [shape = 'u32[]', space=smem, size = 0x4, offset = 0x4, fixed_abs, tag = 'smem constant byte address 0x4 - core index']
  #allocation1 [shape = 'u32[144,128]{1,0:T(1,128)}', space=vmem, size = 0x12000, scoped, tag = 'internal scratch']
  #allocation2 [shape = 'f32[1]{0:T(128)S(6)}', space=smem, size = 0x200, scoped, tag = 'scoped memory for critic_forward.1']
  %s0 = inlined_call_operand.hbm [shape: f32[8,16], index: 0, kind: input, shape index: {}]
  %s1 = inlined_call_operand.hbm [shape: f32[8,8], index: 1, kind: input, shape index: {}]
  %s2 = inlined_call_operand.vmem [shape: bf16[16,64], index: 2, kind: input, shape index: {}]
  %s3 = inlined_call_operand.hbm [shape: bf16[8,64], index: 3, kind: input, shape index: {}]
  %s4 = inlined_call_operand.vmem [shape: f32[1,64], index: 4, kind: input, shape index: {}]
  %s5 = inlined_call_operand.hbm [shape: bf16[64,64], index: 5, kind: input, shape index: {}]
  %s6 = inlined_call_operand.vmem [shape: f32[1,64], index: 6, kind: input, shape index: {}]
  %s7 = inlined_call_operand.vmem [shape: bf16[1,64], index: 7, kind: input, shape index: {}]
  %s8 = inlined_call_operand.<no memory space> [shape: f32[1], index: 8, kind: input, shape index: {}]
  %s9 = inlined_call_operand.hbm [shape: f32[1,8], index: 9, kind: output, shape index: {}]
  %s10 = sld [smem:[#allocation0]]
  $region62: #{critic_forward.1} parent=0
    _
  %s12 = ssub.s32 1, %s10
  %s13 = scalar_select 0, %s12, %s10
  %14 = sst [smem:[#allocation2]] %s8
  $region1: #{critic_forward.1} parent=0
    #allocation3 [shape = 'u8[4096]{0}', space=vmem, size = 0x1000, scoped, tag = 'input window, operand 0, single buffered']
    #allocation4 [shape = 's32[1]{0}', space=sflag, size = 0x4, scoped, tag = 'scoped memory for critic_forward.1']
    #allocation5 [shape = 's32[1]{0}', space=sflag, size = 0x4, scoped, tag = 'scoped memory for critic_forward.1']
    #allocation6 [shape = 'u8[4096]{0}', space=vmem, size = 0x1000, scoped, tag = 'input window, operand 1, single buffered']
    #allocation7 [shape = 's32[1]{0}', space=sflag, size = 0x4, scoped, tag = 'scoped memory for critic_forward.1']
    #allocation8 [shape = 'u8[2048]{0}', space=vmem, size = 0x800, scoped, tag = 'input window, operand 3, single buffered']
    #allocation9 [shape = 'u8[16384]{0}', space=vmem, size = 0x4000, scoped, tag = 'input window, operand 5, single buffered']
    #allocation10 [shape = 's32[1]{0}', space=sflag, size = 0x4, scoped, tag = 'scoped memory for critic_forward.1']
    #allocation11 [shape = 'u8[512]{0}', space=vmem, size = 0x400, scoped, tag = 'output window, operand 0, single buffered']
    %15 = vsyncpa [#allocation4], 0
    %16 = vsyncpa [#allocation7], 0
    %17 = vsyncpa [#allocation10], 0
    %18 = vsyncpa [#allocation5], 0
    // Predicated region
    $region2: #{critic_forward.1} parent=1 // pred_check
      _
    $region3: #{critic_forward.1} parent=1 // pred_check_branch
      %20 = sbr.rel (0) target = $region5
    $region4: #{critic_forward.1} parent=1 // pred_region
      %s22 = ssub.s32 128, 128
      %23 = vsyncadd [#allocation4], %s22
      %s25 = sshll.u32 [#allocation3], 4
      %s26 = int_to_ptr.vmem [resolvable:$true] %s25
      %28 = dma.hbm_to_vmem [thread:$0]  %s0, 128, %s26, [#allocation4]
    $region5: #{critic_forward.1} parent=1 // pred_fallthru
      _
    // Predicated region
    $region6: #{critic_forward.1} parent=1 // pred_check
      _
    $region7: #{critic_forward.1} parent=1 // pred_check_branch
      %30 = sbr.rel (0) target = $region9
    $region8: #{critic_forward.1} parent=1 // pred_region
      %s32 = ssub.s32 128, 128
      %33 = vsyncadd [#allocation7], %s32
      %s35 = sshll.u32 [#allocation6], 4
      %s36 = int_to_ptr.vmem [resolvable:$true] %s35
      %38 = dma.hbm_to_vmem [thread:$0]  %s1, 128, %s36, [#allocation7]
    $region9: #{critic_forward.1} parent=1 // pred_fallthru
      _
    // Predicated region
    $region10: #{critic_forward.1} parent=1 // pred_check
      _
    $region11: #{critic_forward.1} parent=1 // pred_check_branch
      %40 = sbr.rel (0) target = $region13
    $region12: #{critic_forward.1} parent=1 // pred_region
      _
    $region13: #{critic_forward.1} parent=1 // pred_fallthru
      _
    // Predicated region
    $region14: #{critic_forward.1} parent=1 // pred_check
      _
    $region15: #{critic_forward.1} parent=1 // pred_check_branch
      %42 = sbr.rel (0) target = $region17
    $region16: #{critic_forward.1} parent=1 // pred_region
      %s44 = ssub.s32 64, 64
      %45 = vsyncadd [#allocation7], %s44
      %s47 = sshll.u32 [#allocation8], 4
      %s48 = int_to_ptr.vmem [resolvable:$true] %s47
      %50 = dma.hbm_to_vmem [thread:$0]  %s3, 64, %s48, [#allocation7]
    $region17: #{critic_forward.1} parent=1 // pred_fallthru
      _
    // Predicated region
    $region18: #{critic_forward.1} parent=1 // pred_check
      _
    $region19: #{critic_forward.1} parent=1 // pred_check_branch
      %52 = sbr.rel (0) target = $region21
    $region20: #{critic_forward.1} parent=1 // pred_region
      _
    $region21: #{critic_forward.1} parent=1 // pred_fallthru
      _
    // Predicated region
    $region22: #{critic_forward.1} parent=1 // pred_check
      _
    $region23: #{critic_forward.1} parent=1 // pred_check_branch
      %54 = sbr.rel (0) target = $region25
    $region24: #{critic_forward.1} parent=1 // pred_region
      %s56 = ssub.s32 512, 512
      %57 = vsyncadd [#allocation10], %s56
      %s58 = sshll.u32 [#allocation9], 4
      %s59 = int_to_ptr.vmem [resolvable:$true] %s58
      %64 = dma.hbm_to_vmem [thread:$0]  %s5, 512, %s59, [#allocation10], 64, 64, 4
    $region25: #{critic_forward.1} parent=1 // pred_fallthru
      _
    // Predicated region
    $region26: #{critic_forward.1} parent=1 // pred_check
      _
    $region27: #{critic_forward.1} parent=1 // pred_check_branch
      %66 = sbr.rel (0) target = $region29
    $region28: #{critic_forward.1} parent=1 // pred_region
      _
    $region29: #{critic_forward.1} parent=1 // pred_fallthru
      _
    // Predicated region
    $region30: #{critic_forward.1} parent=1 // pred_check
      _
    $region31: #{critic_forward.1} parent=1 // pred_check_branch
      %68 = sbr.rel (0) target = $region33
    $region32: #{critic_forward.1} parent=1 // pred_region
      _
    $region33: #{critic_forward.1} parent=1 // pred_fallthru
      _
    // Predicated region
    $region34: #{critic_forward.1} parent=1 // pred_check
      _
    $region35: #{critic_forward.1} parent=1 // pred_check_branch
      %70 = sbr.rel (0) target = $region37
    $region36: #{critic_forward.1} parent=1 // pred_region
      _
    $region37: #{critic_forward.1} parent=1 // pred_fallthru
      _
    // Predicated region
    $region38: #{critic_forward.1} parent=1 // pred_check
      _
    $region39: #{critic_forward.1} parent=1 // pred_check_branch
      %72 = sbr.rel (0) target = $region41
    $region40: #{critic_forward.1} parent=1 // pred_region
      %73 = dma.done [#allocation4], 128
    $region41: #{critic_forward.1} parent=1 // pred_fallthru
      _
    // Predicated region
    $region42: #{critic_forward.1} parent=1 // pred_check
      _
    $region43: #{critic_forward.1} parent=1 // pred_check_branch
      %75 = sbr.rel (0) target = $region45
    $region44: #{critic_forward.1} parent=1 // pred_region
      %76 = dma.done [#allocation7], 128
    $region45: #{critic_forward.1} parent=1 // pred_fallthru
      _
    // Predicated region
    $region46: #{critic_forward.1} parent=1 // pred_check
      _
    $region47: #{critic_forward.1} parent=1 // pred_check_branch
      %78 = sbr.rel (0) target = $region49
    $region48: #{critic_forward.1} parent=1 // pred_region
      %79 = dma.done [#allocation7], 64
    $region49: #{critic_forward.1} parent=1 // pred_fallthru
      _
    // Predicated region
    $region50: #{critic_forward.1} parent=1 // pred_check
      _
    $region51: #{critic_forward.1} parent=1 // pred_check_branch
      %81 = sbr.rel (0) target = $region53
    $region52: #{critic_forward.1} parent=1 // pred_region
      %82 = dma.done [#allocation10], 512
    $region53: #{critic_forward.1} parent=1 // pred_fallthru
      _
    %v84 = vld [vmem:[#allocation3] sm:$0xff]
    %v85 = vpack.c.bf16 %v84, %v84
    %v86 = vld [vmem:[#allocation6] sm:$0xff]
    %v87 = vpack.c.bf16 %v86, %v86
    %v88 = vld [vmem:[%s2] sm:$0xf]
    %v89 = vld [vmem:[%s2 + $0x4] sm:$0xf]
    %v90 = vld [vmem:[#allocation8] sm:$0xf]
    %vm91 = vcmask 64512
    %v93 = vsel %vm91, %v87, 0
    %vm95 = vcmask 1043456
    %v97 = vsel %vm95, %v90, 0
    %99 = vmatprep.subr.bf16.mxu0 0
    %100 = vmatpush1.bf16.msra.mxu0 0
    %101 = vmatprep.subr.bf16.mxu0 0
    %102 = vmatpush1.bf16.msra.mxu0 0
    %103 = vmatprep.subr.bf16.mxu0 0
    %104 = vmatpush1.bf16.msra.mxu0 0
    %105 = vmatprep.subr.bf16.mxu0 0
    %106 = vmatpush1.bf16.msra.mxu0 0
    %107 = vmatprep.subr.bf16.mxu0 0
    %108 = vmatpush1.bf16.msra.mxu0 0
    %109 = vmatprep.subr.bf16.mxu0 0
    %110 = vmatpush1.bf16.msra.mxu0 0
    %111 = vmatprep.subr.bf16.mxu0 0
    %112 = vmatpush1.bf16.msra.mxu0 0
    %113 = vmatprep.subr.bf16.mxu0 0
    %114 = vmatpush1.bf16.msra.mxu0 %v97
    %115 = vmatprep.subr.bf16.mxu0 0
    %116 = vmatpush2.bf16.msra.mxu0 0
    %117 = vmatprep.subr.bf16.mxu0 0
    %118 = vmatpush2.bf16.msra.mxu0 0
    %119 = vmatprep.subr.bf16.mxu0 0
    %120 = vmatpush2.bf16.msra.mxu0 0
    %121 = vmatprep.subr.bf16.mxu0 0
    %122 = vmatpush2.bf16.msra.mxu0 0
    %123 = vmatprep.subr.bf16.mxu0 0
    %124 = vmatpush2.bf16.msra.mxu0 0
    %125 = vmatprep.subr.bf16.mxu0 0
    %126 = vmatpush2.bf16.msra.mxu0 0
    %127 = vmatprep.subr.bf16.mxu0 0
    %128 = vmatpush2.bf16.msra.mxu0 0
    %129 = vmatprep.subr.bf16.mxu0 0
    %130 = vmatpush2.bf16.msra.mxu0 0
    %131 = vmatprep.mubr.bf16.mxu0 0
    %132 = vmatmul.mubr.bf16.gmra.mxu0 %v93
    %v133 = vpop.f32.mrf.mxu0
    %v134 = vadd.f32 0.0, %v133
    %v135 = vpop.f32.mrf.mxu0
    %v136 = vpop.f32.mrf.mxu0
    %v137 = vpop.f32.mrf.mxu0
    %138 = vdwg.mxu0
    %v141 = vunpack.c.l.b16 %v88
    %v142 = vunpack.c.l.b16 %v89
    %v143 = vpack.c.b16 %v142, %v141
    %vm145 = vcmask 130048
    %v147 = vsel %vm145, %v85, 0
    %149 = vmatprep.subr.bf16.mxu0 0
    %150 = vmatpush1.bf16.msra.mxu0 0
    %151 = vmatprep.subr.bf16.mxu0 0
    %152 = vmatpush1.bf16.msra.mxu0 0
    %153 = vmatprep.subr.bf16.mxu0 0
    %154 = vmatpush1.bf16.msra.mxu0 0
    %155 = vmatprep.subr.bf16.mxu0 0
    %156 = vmatpush1.bf16.msra.mxu0 0
    %157 = vmatprep.subr.bf16.mxu0 0
    %158 = vmatpush1.bf16.msra.mxu0 0
    %159 = vmatprep.subr.bf16.mxu0 0
    %160 = vmatpush1.bf16.msra.mxu0 0
    %161 = vmatprep.subr.bf16.mxu0 0
    %162 = vmatpush1.bf16.msra.mxu0 0
    %163 = vmatprep.subr.bf16.mxu0 0
    %164 = vmatpush1.bf16.msra.mxu0 %v143
    %165 = vmatprep.subr.bf16.mxu0 0
    %166 = vmatpush2.bf16.msra.mxu0 0
    %167 = vmatprep.subr.bf16.mxu0 0
    %168 = vmatpush2.bf16.msra.mxu0 0
    %169 = vmatprep.subr.bf16.mxu0 0
    %170 = vmatpush2.bf16.msra.mxu0 0
    %171 = vmatprep.subr.bf16.mxu0 0
    %172 = vmatpush2.bf16.msra.mxu0 0
    %173 = vmatprep.subr.bf16.mxu0 0
    %174 = vmatpush2.bf16.msra.mxu0 0
    %175 = vmatprep.subr.bf16.mxu0 0
    %176 = vmatpush2.bf16.msra.mxu0 0
    %177 = vmatprep.subr.bf16.mxu0 0
    %178 = vmatpush2.bf16.msra.mxu0 0
    %179 = vmatprep.subr.bf16.mxu0 0
    %180 = vmatpush2.bf16.msra.mxu0 0
    %181 = vmatprep.mubr.bf16.mxu0 0
    %182 = vmatmul.mubr.bf16.gmra.mxu0 %v147
    %v183 = vpop.f32.mrf.mxu0
    %v184 = vadd.f32 %v134, %v183
    %v185 = vpop.f32.mrf.mxu0
    %v186 = vpop.f32.mrf.mxu0
    %v187 = vpop.f32.mrf.mxu0
    %188 = vdwg.mxu0
    %v189 = vld [vmem:[%s4] sm:$0x1]
    %v191 = vlaneseq
    %v192 = vshrl.u32 %v191, 7
    %v193 = vsub.s32 0, %v192
    %v194 = vrot.slane %v189, %v193
    %v196 = vadd.f32 %v184, %v194
    %v197 = vmax.f32 %v196, 0.0
    %v198 = vpack.c.bf16 %v197, %v197
    %v199 = vld [vmem:[#allocation9] sm:$0xf]
    %v200 = vld [vmem:[#allocation9 + $0x4] sm:$0xf]
    %v201 = vld [vmem:[#allocation9 + $0x8] sm:$0xf]
    %v202 = vld [vmem:[#allocation9 + $0xc] sm:$0xf]
    %v203 = vld [vmem:[#allocation9 + $0x10] sm:$0xf]
    %v204 = vld [vmem:[#allocation9 + $0x14] sm:$0xf]
    %v205 = vld [vmem:[#allocation9 + $0x18] sm:$0xf]
    %v206 = vld [vmem:[#allocation9 + $0x1c] sm:$0xf]
    %v207 = vld [vmem:[%s6] sm:$0x1]
    %v209 = vlaneseq
    %v210 = vshrl.u32 %v209, 7
    %v211 = vsub.s32 0, %v210
    %v212 = vrot.slane %v207, %v211
    %v222 = vunpack.c.l.b16 %v199
    %v223 = vunpack.c.l.b16 %v200
    %v224 = vunpack.c.l.b16 %v201
    %v225 = vunpack.c.l.b16 %v202
    %v226 = vunpack.c.l.b16 %v203
    %v227 = vunpack.c.l.b16 %v204
    %v228 = vunpack.c.l.b16 %v205
    %v229 = vunpack.c.l.b16 %v206
    %v230 = vpack.c.b16 %v223, %v222
    %v231 = vpack.c.b16 %v225, %v224
    %v232 = vpack.c.b16 %v227, %v226
    %v233 = vpack.c.b16 %v229, %v228
    %vm238 = vcmask 523264
    %v240 = vsel %vm238, %v198, 0
    %242 = vmatprep.subr.bf16.mxu0 0
    %243 = vmatpush1.bf16.msra.mxu0 0
    %244 = vmatprep.subr.bf16.mxu0 0
    %245 = vmatpush1.bf16.msra.mxu0 0
    %246 = vmatprep.subr.bf16.mxu0 0
    %247 = vmatpush1.bf16.msra.mxu0 0
    %248 = vmatprep.subr.bf16.mxu0 0
    %249 = vmatpush1.bf16.msra.mxu0 0
    %250 = vmatprep.subr.bf16.mxu0 0
    %251 = vmatpush1.bf16.msra.mxu0 %v233
    %252 = vmatprep.subr.bf16.mxu0 0
    %253 = vmatpush1.bf16.msra.mxu0 %v232
    %254 = vmatprep.subr.bf16.mxu0 0
    %255 = vmatpush1.bf16.msra.mxu0 %v231
    %256 = vmatprep.subr.bf16.mxu0 0
    %257 = vmatpush1.bf16.msra.mxu0 %v230
    %258 = vmatprep.subr.bf16.mxu0 0
    %259 = vmatpush2.bf16.msra.mxu0 0
    %260 = vmatprep.subr.bf16.mxu0 0
    %261 = vmatpush2.bf16.msra.mxu0 0
    %262 = vmatprep.subr.bf16.mxu0 0
    %263 = vmatpush2.bf16.msra.mxu0 0
    %264 = vmatprep.subr.bf16.mxu0 0
    %265 = vmatpush2.bf16.msra.mxu0 0
    %266 = vmatprep.subr.bf16.mxu0 0
    %267 = vmatpush2.bf16.msra.mxu0 0
    %268 = vmatprep.subr.bf16.mxu0 0
    %269 = vmatpush2.bf16.msra.mxu0 0
    %270 = vmatprep.subr.bf16.mxu0 0
    %271 = vmatpush2.bf16.msra.mxu0 0
    %272 = vmatprep.subr.bf16.mxu0 0
    %273 = vmatpush2.bf16.msra.mxu0 0
    %274 = vmatprep.mubr.bf16.mxu0 0
    %275 = vmatmul.mubr.bf16.gmra.mxu0 %v240
    %v276 = vpop.f32.mrf.mxu0
    %v277 = vadd.f32 %v212, %v276
    %v278 = vpop.f32.mrf.mxu0
    %v279 = vpop.f32.mrf.mxu0
    %v280 = vpop.f32.mrf.mxu0
    %281 = vdwg.mxu0
    %v282 = vmax.f32 %v277, 0.0
    %v283 = vld [vmem:[%s7] sm:$0x1]
    %v284 = vpack.c.bf16 %v282, %v282
    %s285 = sld [smem:[#allocation2]]
    %v286 = vstv %s285
    %v288 = vsel %vm238, %v283, 0
    %v291 = vsel %vm238, %v284, 0
    %293 = vmatprep.subr.bf16.mxu0 0
    %294 = vmatpush1.bf16.xpose.msra.mxu0 0
    %295 = vmatprep.subr.bf16.mxu0 0
    %296 = vmatpush1.bf16.xpose.msra.mxu0 0
    %297 = vmatprep.subr.bf16.mxu0 0
    %298 = vmatpush1.bf16.xpose.msra.mxu0 0
    %299 = vmatprep.subr.bf16.mxu0 0
    %300 = vmatpush1.bf16.xpose.msra.mxu0 0
    %301 = vmatprep.subr.bf16.mxu0 0
    %302 = vmatpush1.bf16.xpose.msra.mxu0 0
    %303 = vmatprep.subr.bf16.mxu0 0
    %304 = vmatpush1.bf16.xpose.msra.mxu0 0
    %305 = vmatprep.subr.bf16.mxu0 0
    %306 = vmatpush1.bf16.xpose.msra.mxu0 0
    %307 = vmatprep.subr.bf16.mxu0 0
    %308 = vmatpush1.bf16.xpose.msra.mxu0 %v291
    %309 = vmatprep.subr.bf16.mxu0 0
    %310 = vmatpush2.bf16.xpose.msra.mxu0 0
    %311 = vmatprep.subr.bf16.mxu0 0
    %312 = vmatpush2.bf16.xpose.msra.mxu0 0
    %313 = vmatprep.subr.bf16.mxu0 0
    %314 = vmatpush2.bf16.xpose.msra.mxu0 0
    %315 = vmatprep.subr.bf16.mxu0 0
    %316 = vmatpush2.bf16.xpose.msra.mxu0 0
    %317 = vmatprep.subr.bf16.mxu0 0
    %318 = vmatpush2.bf16.xpose.msra.mxu0 0
    %319 = vmatprep.subr.bf16.mxu0 0
    %320 = vmatpush2.bf16.xpose.msra.mxu0 0
    %321 = vmatprep.subr.bf16.mxu0 0
    %322 = vmatpush2.bf16.xpose.msra.mxu0 0
    %323 = vmatprep.subr.bf16.mxu0 0
    %324 = vmatpush2.bf16.xpose.msra.mxu0 0
    %325 = vmatprep.mubr.bf16.mxu0 0
    %326 = vmatmul.mubr.bf16.gmra.mxu0 %v288
    %v327 = vpop.f32.mrf.mxu0
    %v328 = vadd.f32 %v286, %v327
    %v329 = vpop.f32.mrf.mxu0
    %v330 = vpop.f32.mrf.mxu0
    %v331 = vpop.f32.mrf.mxu0
    %332 = vdwg.mxu0
    %vm333 = vcmask 57344
    %334 = vst.msk [vmem:[#allocation11] sm:$0x1] %vm333, %v328
    // Predicated region
    $region54: #{critic_forward.1} parent=1 // pred_check
      _
    $region55: #{critic_forward.1} parent=1 // pred_check_branch
      %336 = sbr.rel (0) target = $region57
    $region56: #{critic_forward.1} parent=1 // pred_region
      %s338 = ssub.s32 16, 16
      %339 = vsyncadd [#allocation5], %s338
      %s341 = sshll.u32 [#allocation11], 4
      %s342 = int_to_ptr.vmem [resolvable:$true] %s341
      %344 = dma.vmem_to_hbm [thread:$0]  %s342, 16, %s9, [#allocation5]
    $region57: #{critic_forward.1} parent=1 // pred_fallthru
      _
    // Predicated region
    $region58: #{critic_forward.1} parent=1 // pred_check
      _
    $region59: #{critic_forward.1} parent=1 // pred_check_branch
      %346 = sbr.rel (0) target = $region61
    $region60: #{critic_forward.1} parent=1 // pred_region
      %347 = dma.done [#allocation5], 16
    $region61: #{critic_forward.1} parent=1 // pred_fallthru
      _
    %348 = vsyncpa [#allocation4], 1
    %349 = vsyncpa [#allocation7], 1
    %350 = vsyncpa [#allocation10], 1
    %351 = vsyncpa [#allocation5], 1

</llo_original>
